<compile_context>
chip_gen: v7x
topology: tpu7x:2x2x1
jax: 0.10.0
libtpu: 0.0.40
codegen_flags: <defaults>
</compile_context>

<pallas_src>
import jax
import jax.numpy as jnp
from jax.experimental import pallas as pl
from jax.experimental.pallas import tpu as pltpu


def _patch_embed_kernel(x_ref, w_ref, b_ref, o_ref):
    # MXU matmul with f32 accumulation; bias add happens on the VPU over the
    # f32 accumulator (the VPU slot has slack next to the matmul).
    acc = jnp.dot(x_ref[...], w_ref[...], preferred_element_type=jnp.float32)
    o_ref[...] = (acc + b_ref[...]).astype(o_ref.dtype)


def _round_up(x, m):
    return ((x + m - 1) // m) * m


def _vmem_budget_bytes():
    # Per-generation scoped-VMEM budget: 64 MiB chips (v7x per-TC) get a 48 MiB
    # cap (headroom for Mosaic internal scratch), 128 MiB chips (v5e/v6e) 96 MiB.
    try:
        cap = int(pltpu.get_tpu_info().vmem_capacity_bytes)
    except Exception:
        cap = 64 << 20  # conservative default
    if cap <= (64 << 20):
        return 48 << 20
    return 96 << 20


def _choose_tile_rows(M, K_pad, E_pad, in_bytes, out_bytes, vmem_budget):
    # Resident single-buffered weight + bias, double-buffered x / out tiles.
    resident = K_pad * E_pad * in_bytes + E_pad * 4
    per_row = 2 * K_pad * in_bytes + 2 * E_pad * out_bytes
    tm_cap = max((vmem_budget - resident - (4 << 20)) // per_row, 8)
    align = 128 if M >= 256 else 8
    # >= 2 grid steps whenever M allows: megacore sharding + DMA/compute overlap
    # even for small-batch inference.
    tm_half = _round_up(max(pl.cdiv(M, 2), align), align)
    tm = min(2048, tm_cap, tm_half)
    return max(align, (tm // align) * align)


def _single_buffered_spec(shape, index_map):
    # Constant-indexed block: one VMEM copy is enough; skip double-buffering.
    try:
        return pl.BlockSpec(shape, index_map, pipeline_mode=pl.Buffered(1))
    except TypeError:  # older signature without pipeline_mode
        return pl.BlockSpec(shape, index_map)


def patch_embedding(x, weight, bias, *, patch_size,
                    compute_dtype=jnp.bfloat16, out_dtype=None):
    """x: (B, C, H, W) NCHW. weight: (E, C, P, P) Conv2d layout. bias: (E,).

    Returns (B, num_patches, E) == Conv2d(k=s=P)(x).flatten(2).transpose(1, 2).
    """
    B, C, H, W = x.shape
    E = weight.shape[0]
    P = patch_size
    gh, gw = H // P, W // P
    num_patches = gh * gw
    if out_dtype is None:
        out_dtype = x.dtype

    M = B * num_patches
    K = C * P * P

    # Lane-dense output: pad embed dim to a multiple of 128 (full vst, no vst.msk).
    E_pad = _round_up(E, 128)
    # Pad the contraction dim only when the byte overhead is small; a full-extent
    # K block is legal either way, this just keeps MXU feeds full-width.
    K_pad = _round_up(K, 128)
    if (K_pad - K) * 4 > K:
        K_pad = K

    # Patchify glue (plain JAX): the transpose materializes once in HBM; the
    # compute-dtype cast and K zero-pad fuse into that same copy (no extra pass).
    patches = x.reshape(B, C, gh, P, gw, P).transpose(0, 2, 4, 1, 3, 5)
    patches = patches.reshape(M, K).astype(compute_dtype)
    if K_pad != K:
        patches = jnp.pad(patches, ((0, 0), (0, K_pad - K)))

    w_mat = weight.reshape(E, K).T.astype(compute_dtype)   # (K, E)
    b_mat = bias.astype(jnp.float32).reshape(1, E)         # f32: added on the f32 acc
    if K_pad != K:
        w_mat = jnp.pad(w_mat, ((0, K_pad - K), (0, 0)))
    if E_pad != E:
        w_mat = jnp.pad(w_mat, ((0, 0), (0, E_pad - E)))
        b_mat = jnp.pad(b_mat, ((0, 0), (0, E_pad - E)))

    in_bytes = jnp.dtype(compute_dtype).itemsize
    out_bytes = jnp.dtype(out_dtype).itemsize
    budget = _vmem_budget_bytes()
    TM = _choose_tile_rows(M, K_pad, E_pad, in_bytes, out_bytes, budget)

    grid = (pl.cdiv(M, TM),)  # ragged last block handled by Pallas (no jnp.pad on M)

    working_set = (K_pad * E_pad * in_bytes + E_pad * 4
                   + 2 * TM * K_pad * in_bytes + 2 * TM * E_pad * out_bytes)
    vmem_limit = int(min(budget, max(working_set + (8 << 20), 32 << 20)))

    out_flat = pl.pallas_call(
        _patch_embed_kernel,
        out_shape=jax.ShapeDtypeStruct((M, E_pad), out_dtype),
        grid_spec=pltpu.PrefetchScalarGridSpec(
            num_scalar_prefetch=0,
            grid=grid,
            in_specs=[
                pl.BlockSpec((TM, K_pad), lambda i: (i, 0)),
                _single_buffered_spec((K_pad, E_pad), lambda i: (0, 0)),
                _single_buffered_spec((1, E_pad), lambda i: (0, 0)),
            ],
            out_specs=pl.BlockSpec((TM, E_pad), lambda i: (i, 0)),
        ),
        compiler_params=pltpu.CompilerParams(
            dimension_semantics=("parallel",),
            vmem_limit_bytes=vmem_limit,
        ),
    )(patches, w_mat, b_mat)

    if E_pad != E:
        out_flat = out_flat[:, :E]  # only the tiny-E path pays this copy
    return out_flat.reshape(B, num_patches, E)


def _reference(x, weight, bias, patch_size):
    """Pure-JAX reference using a real strided convolution (matches nn.Conv2d)."""
    y = jax.lax.conv_general_dilated(
        x, weight,
        window_strides=(patch_size, patch_size),
        padding="VALID",
        dimension_numbers=("NCHW", "OIHW", "NCHW"),
    ) + bias.reshape(1, -1, 1, 1)
    B, E, gh, gw = y.shape
    return y.reshape(B, E, gh * gw).transpose(0, 2, 1)


if __name__ == "__main__":
    # Small shapes consistent with the module: img=16, patch=4 -> 16 patches.
    B, C, H, W = 2, 3, 16, 16
    P = 4
    E = 32

    key = jax.random.PRNGKey(0)
    kx, kw, kb = jax.random.split(key, 3)
    x = jax.random.normal(kx, (B, C, H, W), dtype=jnp.float32)
    fan_in = C * P * P
    bound = 1.0 / fan_in ** 0.5
    weight = jax.random.uniform(kw, (E, C, P, P), jnp.float32, minval=-bound, maxval=bound)
    bias = jax.random.uniform(kb, (E,), jnp.float32, minval=-bound, maxval=bound)

    ref = _reference(x, weight, bias, P)

    # Default path: bf16 MXU feeds with f32 accumulation (intentional precision
    # change vs. the f32 conv reference -> relaxed tolerance).
    out = jax.block_until_ready(patch_embedding(x, weight, bias, patch_size=P))
    assert out.shape == (B, (H // P) * (W // P), E), out.shape
    assert out.dtype == x.dtype, out.dtype
    assert jnp.allclose(out, ref, atol=2e-2, rtol=2e-2), "bf16 path mismatch vs conv reference"

    # f32 compute path matches the conv reference tightly.
    out_f32 = jax.block_until_ready(
        patch_embedding(x, weight, bias, patch_size=P, compute_dtype=jnp.float32))
    assert jnp.allclose(out_f32, ref, atol=1e-5, rtol=1e-5), "f32 path mismatch vs conv reference"

    print("KERNEL_OK")
</pallas_src>

<mosaic_0001>
module attributes {stable_mosaic.version = 11 : i64} {
  func.func @_patch_embed_kernel(%arg0: i32, %arg1: memref<16x48xbf16, #tpu.memory_space<vmem>>, %arg2: memref<48x128xbf16, #tpu.memory_space<vmem>>, %arg3: memref<1x128xf32, #tpu.memory_space<vmem>>, %arg4: memref<16x128xf32, #tpu.memory_space<vmem>>) attributes {dimension_semantics = [#tpu.dimension_semantics<parallel>], iteration_bounds = array<i64: 2>, scalar_prefetch = 0 : i64, scratch_operands = 0 : i64, tpu.core_type = #tpu.core_type<tc>, window_params = [{transform_indices = @transform_0, window_bounds = array<i64: 16, 48>}, {pipeline_mode = #tpu.pipeline_mode<synchronous>, transform_indices = @transform_1, window_bounds = array<i64: 48, 128>}, {pipeline_mode = #tpu.pipeline_mode<synchronous>, transform_indices = @transform_2, window_bounds = array<i64: 1, 128>}, {transform_indices = @transform_3, window_bounds = array<i64: 16, 128>}]} {
    %c0 = arith.constant 0 : index
    %c0_0 = arith.constant 0 : index
    %0 = vector.load %arg1[%c0, %c0_0] : memref<16x48xbf16, #tpu.memory_space<vmem>>, vector<16x48xbf16>
    %c0_1 = arith.constant 0 : index
    %c0_2 = arith.constant 0 : index
    %1 = vector.load %arg2[%c0_1, %c0_2] : memref<48x128xbf16, #tpu.memory_space<vmem>>, vector<48x128xbf16>
    %cst = arith.constant dense<0.000000e+00> : vector<16x128xf32>
    %2 = tpu.matmul %0, %1, %cst {dimension_numbers = #tpu.dot_dimension_numbers<[1], [0], [0], [1], [0, 0, 1, 1], [], []>} : vector<16x48xbf16>, vector<48x128xbf16>, vector<16x128xf32> -> vector<16x128xf32>
    %c0_3 = arith.constant 0 : index
    %c0_4 = arith.constant 0 : index
    %3 = vector.load %arg3[%c0_3, %c0_4] : memref<1x128xf32, #tpu.memory_space<vmem>>, vector<1x128xf32>
    %4 = vector.broadcast %3 : vector<1x128xf32> to vector<16x128xf32>
    %5 = arith.addf %2, %4 : vector<16x128xf32>
    %c0_5 = arith.constant 0 : index
    %c0_6 = arith.constant 0 : index
    %6 = vector.load %arg4[%c0_5, %c0_6] : memref<16x128xf32, #tpu.memory_space<vmem>>, vector<16x128xf32>
    tpu.vector_store %arg4[%c0_5, %c0_6], %5 {strides = array<i32>} : memref<16x128xf32, #tpu.memory_space<vmem>>, vector<16x128xf32>,
    return
  }
  func.func @transform_0(%arg0: i32) -> (i32, i32) {
    %c0_i32 = arith.constant 0 : i32
    %c0_i32_0 = arith.constant 0 : i32
    return %arg0, %c0_i32 : i32, i32
  }
  func.func @transform_1(%arg0: i32) -> (i32, i32) {
    %c0_i32 = arith.constant 0 : i32
    %c0_i32_0 = arith.constant 0 : i32
    %c0_i32_1 = arith.constant 0 : i32
    return %c0_i32, %c0_i32_0 : i32, i32
  }
  func.func @transform_2(%arg0: i32) -> (i32, i32) {
    %c0_i32 = arith.constant 0 : i32
    %c0_i32_0 = arith.constant 0 : i32
    %c0_i32_1 = arith.constant 0 : i32
    return %c0_i32, %c0_i32_0 : i32, i32
  }
  func.func @transform_3(%arg0: i32) -> (i32, i32) {
    %c0_i32 = arith.constant 0 : i32
    %c0_i32_0 = arith.constant 0 : i32
    return %arg0, %c0_i32 : i32, i32
  }
}

</mosaic_0001>

<llo_original>
// kernel: tpu_custom_call.1
$region0: #{tpu_custom_call.1}
  #allocation0 [shape = 'u32[]', space=smem, size = 0x4, offset = 0x4, fixed_abs, tag = 'smem constant byte address 0x4 - core index']
  #allocation1 [shape = 'u32[144,128]{1,0:T(1,128)}', space=vmem, size = 0x12000, scoped, tag = 'internal scratch']
  %s0 = inlined_call_operand.hbm [shape: bf16[32,48], index: 0, kind: input, shape index: {}]
  %s1 = inlined_call_operand.hbm [shape: bf16[48,128], index: 1, kind: input, shape index: {}]
  %s2 = inlined_call_operand.vmem [shape: f32[1,128], index: 2, kind: input, shape index: {}]
  %s3 = inlined_call_operand.hbm [shape: f32[32,128], index: 3, kind: output, shape index: {}]
  %s4 = sld [smem:[#allocation0]]
  $region53: #{tpu_custom_call.1} parent=0
    _
  %s6 = ssub.s32 1, %s4
  %s7 = scalar_select 0, %s6, %s4
  $region1: #{tpu_custom_call.1} parent=0
    #allocation2 [shape = 'u8[8192]{0}', space=vmem, size = 0x2000, scoped, tag = 'input window, operand 0']
    #allocation3 [shape = 's32[2]{0}', space=sflag, size = 0x8, scoped, tag = 'scoped memory for tpu_custom_call.1']
    #allocation4 [shape = 's32[2]{0}', space=sflag, size = 0x8, scoped, tag = 'scoped memory for tpu_custom_call.1']
    #allocation5 [shape = 'u8[12288]{0}', space=vmem, size = 0x3000, scoped, tag = 'input window, operand 1, single buffered']
    #allocation6 [shape = 's32[1]{0}', space=sflag, size = 0x4, scoped, tag = 'scoped memory for tpu_custom_call.1']
    #allocation7 [shape = 'u8[16384]{0}', space=vmem, size = 0x4000, scoped, tag = 'output window, operand 0']
    %8 = vsyncpa [#allocation3], 0
    %s9 = scalar_lea.sflag [#allocation3], 1
    %10 = vsyncpa %s9, 0
    %11 = vsyncpa [#allocation6], 0
    %12 = vsyncpa [#allocation4], 0
    %s13 = scalar_lea.sflag [#allocation4], 1
    %14 = vsyncpa %s13, 0
    loop: start=0, step=1, limit=4
    $region2: #{tpu_custom_call.1} parent=1 // loop_pre_header
      _
    $region3: #{tpu_custom_call.1} parent=1 // loop_header
      %s16 = sphi 0, %s20
      %p17 = scmp.ge.s32.totalorder %s16, 4
      %s26 = sphi 0, %s28
      %s29 = sphi 0, %s26
      %s30 = sphi 0, %s29
      %s46 = sphi 0, %s30
      %s50 = sphi 0, %s50
      %s52 = sphi 0, %s50
      %s53 = sphi 0, %s52
      %s67 = sphi 0, %s53
      %s71 = sphi 0, %s71
      %s73 = sphi 0, %s71
      %s74 = sphi 0, %s73
      %s88 = sphi 0, %s74
      %s94 = sphi 0, %s96
      %s97 = sphi 0, %s94
      %s98 = sphi 0, %s97
      %s114 = sphi 0, %s98
    $region4: #{tpu_custom_call.1} parent=1 // loop_header_branch
      %19 = sbr.rel (%p17) target = $region8
    $region5: #{tpu_custom_call.1} parent=1 // loop_body
      %s21 = ssub.s32 %s16, 1
      %s22 = ssub.s32 %s16, 2
      %s23 = sadd.s32 %s16, 1
      %s24 = ssub.s32 %s16, %s23
      %p25 = scmp.eq.s32.totalorder %s24, 0
      %s27 = sadd.s32 %s26, 1
      %s28 = scalar_select %p25, %s26, %s27
      %p31 = pneg %p25
      %p32 = scmp.eq.s32.totalorder %s16, 1
      %p33 = por %p31, %p32
      %p34 = scmp.ne.s32.totalorder %s26, %s29
      %p35 = scmp.eq.s32.totalorder %s16, 0
      %p36 = por %p34, %p35
      %p37 = scmp.ne.s32.totalorder %s26, %s29
      %p38 = scmp.eq.s32.totalorder %s21, 1
      %p39 = por %p37, %p38
      %p40 = scmp.ne.s32.totalorder %s29, %s30
      %p41 = scmp.eq.s32.totalorder %s21, 0
      %p42 = por %p40, %p41
      %p43 = scmp.ne.s32.totalorder %s29, %s30
      %p44 = scmp.eq.s32.totalorder %s22, 1
      %p45 = por %p43, %p44
      %p47 = scmp.ne.s32.totalorder %s30, %s46
      %p48 = scmp.eq.s32.totalorder %s22, 0
      %p49 = por %p47, %p48
      %s51 = sadd.s32 %s50, 1
      %p54 = scmp.eq.s32.totalorder %s16, 1
      %p55 = scmp.ne.s32.totalorder %s50, %s52
      %p56 = scmp.eq.s32.totalorder %s16, 0
      %p57 = por %p55, %p56
      %p58 = scmp.ne.s32.totalorder %s50, %s52
      %p59 = scmp.eq.s32.totalorder %s21, 1
      %p60 = por %p58, %p59
      %p61 = scmp.ne.s32.totalorder %s52, %s53
      %p62 = scmp.eq.s32.totalorder %s21, 0
      %p63 = por %p61, %p62
      %p64 = scmp.ne.s32.totalorder %s52, %s53
      %p65 = scmp.eq.s32.totalorder %s22, 1
      %p66 = por %p64, %p65
      %p68 = scmp.ne.s32.totalorder %s53, %s67
      %p69 = scmp.eq.s32.totalorder %s22, 0
      %p70 = por %p68, %p69
      %s72 = sadd.s32 %s71, 1
      %p75 = scmp.eq.s32.totalorder %s16, 1
      %p76 = scmp.ne.s32.totalorder %s71, %s73
      %p77 = scmp.eq.s32.totalorder %s16, 0
      %p78 = por %p76, %p77
      %p79 = scmp.ne.s32.totalorder %s71, %s73
      %p80 = scmp.eq.s32.totalorder %s21, 1
      %p81 = por %p79, %p80
      %p82 = scmp.ne.s32.totalorder %s73, %s74
      %p83 = scmp.eq.s32.totalorder %s21, 0
      %p84 = por %p82, %p83
      %p85 = scmp.ne.s32.totalorder %s73, %s74
      %p86 = scmp.eq.s32.totalorder %s22, 1
      %p87 = por %p85, %p86
      %p89 = scmp.ne.s32.totalorder %s74, %s88
      %p90 = scmp.eq.s32.totalorder %s22, 0
      %p91 = por %p89, %p90
      %s92 = ssub.s32 %s16, %s23
      %p93 = scmp.eq.s32.totalorder %s92, 0
      %s95 = sadd.s32 %s94, 1
      %s96 = scalar_select %p93, %s94, %s95
      %p99 = pneg %p93
      %p100 = scmp.eq.s32.totalorder %s16, 1
      %p101 = por %p99, %p100
      %p102 = scmp.ne.s32.totalorder %s94, %s97
      %p103 = scmp.eq.s32.totalorder %s16, 0
      %p104 = por %p102, %p103
      %p105 = scmp.ne.s32.totalorder %s94, %s97
      %p106 = scmp.eq.s32.totalorder %s21, 1
      %p107 = por %p105, %p106
      %p108 = scmp.ne.s32.totalorder %s97, %s98
      %p109 = scmp.eq.s32.totalorder %s21, 0
      %p110 = por %p108, %p109
      %p111 = scmp.ne.s32.totalorder %s97, %s98
      %p112 = scmp.eq.s32.totalorder %s22, 1
      %p113 = por %p111, %p112
      %p115 = scmp.ne.s32.totalorder %s98, %s114
      %p116 = scmp.eq.s32.totalorder %s22, 0
      %p117 = por %p115, %p116
      %p118 = scmp.le.s32.totalorder 1, %s16
      %p119 = scmp.lt.s32.totalorder %s16, 3
      %p120 = pnand %p118, %p119
      %p121 = pneg %p120
      // Predicated region
      $region9: #{tpu_custom_call.1} parent=5 // pred_check
        _
      $region10: #{tpu_custom_call.1} parent=5 // pred_check_branch
        %123 = sbr.rel (%p120) target = $region12
      $region11: #{tpu_custom_call.1} parent=5 // pred_region
        %s124 = ssub.s32 %s16, 1
        // Predicated region
        $region13: #{tpu_custom_call.1} parent=11 // pred_check
          %p125 = pneg %p63
        $region14: #{tpu_custom_call.1} parent=11 // pred_check_branch
          %127 = sbr.rel (%p125) target = $region16
        $region15: #{tpu_custom_call.1} parent=11 // pred_region
          %s129 = ssub.s32 384, 384
          %130 = vsyncadd [#allocation6], %s129
          %s131 = sshll.u32 [#allocation5], 4
          %s132 = int_to_ptr.vmem [resolvable:$true] %s131
          %137 = dma.hbm_to_vmem [thread:$0]  %s1, 384, %s132, [#allocation6], 64, 64, 4
        $region16: #{tpu_custom_call.1} parent=11 // pred_fallthru
          _
        // Predicated region
        $region17: #{tpu_custom_call.1} parent=11 // pred_check
          %p138 = pneg %p84
        $region18: #{tpu_custom_call.1} parent=11 // pred_check_branch
          %140 = sbr.rel (%p138) target = $region20
        $region19: #{tpu_custom_call.1} parent=11 // pred_region
          _
        $region20: #{tpu_custom_call.1} parent=11 // pred_fallthru
          _
      $region12: #{tpu_custom_call.1} parent=5 // pred_fallthru
        _
      %p141 = scmp.lt.s32.totalorder %s16, 2
      // Predicated region
      $region21: #{tpu_custom_call.1} parent=5 // pred_check
        %p142 = pneg %p141
      $region22: #{tpu_custom_call.1} parent=5 // pred_check_branch
        %144 = sbr.rel (%p142) target = $region24
      $region23: #{tpu_custom_call.1} parent=5 // pred_region
        // Predicated region
        $region25: #{tpu_custom_call.1} parent=23 // pred_check
          %p145 = pneg %p36
        $region26: #{tpu_custom_call.1} parent=23 // pred_check_branch
          %147 = sbr.rel (%p145) target = $region28
        $region27: #{tpu_custom_call.1} parent=23 // pred_region
          %s148 = sand.u32 %s26, 1
          %s149 = scalar_lea.sflag [#allocation3], %s148
          %s150 = sand.u32 %s26, 1
          %s151 = smul.addr %s150, 8
          %s152 = scalar_lea.vmem [#allocation2], %s151
          %s153 = smul.u32 2, %s16
          %s155 = ssub.s32 128, 128
          %156 = vsyncadd %s149, %s155
          %s157 = smul.addr %s153, 64
          %s158 = scalar_lea.hbm %s0, %s157
          %s159 = sshll.u32 %s152, 4
          %s160 = int_to_ptr.vmem [resolvable:$true] %s159
          %165 = dma.hbm_to_vmem [thread:$0]  %s158, 128, %s160, %s149, 64, 64, 4
        $region28: #{tpu_custom_call.1} parent=23 // pred_fallthru
          _
      $region24: #{tpu_custom_call.1} parent=5 // pred_fallthru
        _
      %p166 = scmp.le.s32.totalorder 1, %s16
      %p167 = scmp.lt.s32.totalorder %s16, 3
      %p168 = pnand %p166, %p167
      %p169 = pneg %p168
      // Predicated region
      $region29: #{tpu_custom_call.1} parent=5 // pred_check
        _
      $region30: #{tpu_custom_call.1} parent=5 // pred_check_branch
        %171 = sbr.rel (%p168) target = $region32
      $region31: #{tpu_custom_call.1} parent=5 // pred_region
        %s172 = ssub.s32 %s16, 1
        %s173 = sand.u32 %s29, 1
        %s174 = scalar_lea.sflag [#allocation3], %s173
        %s175 = sand.u32 %s29, 1
        %s176 = smul.addr %s175, 8
        %s177 = scalar_lea.vmem [#allocation2], %s176
        // Predicated region
        $region33: #{tpu_custom_call.1} parent=31 // pred_check
          %p178 = pneg %p42
        $region34: #{tpu_custom_call.1} parent=31 // pred_check_branch
          %180 = sbr.rel (%p178) target = $region36
        $region35: #{tpu_custom_call.1} parent=31 // pred_region
          %181 = dma.done %s174, 128
        $region36: #{tpu_custom_call.1} parent=31 // pred_fallthru
          _
        // Predicated region
        $region37: #{tpu_custom_call.1} parent=31 // pred_check
          %p182 = pneg %p63
        $region38: #{tpu_custom_call.1} parent=31 // pred_check_branch
          %184 = sbr.rel (%p182) target = $region40
        $region39: #{tpu_custom_call.1} parent=31 // pred_region
          %185 = dma.done [#allocation6], 384
        $region40: #{tpu_custom_call.1} parent=31 // pred_fallthru
          _
        %s186 = sand.u32 %s29, 1
        %s187 = scalar_lea.sflag [#allocation3], %s186
        %s188 = sand.u32 %s29, 1
        %s189 = smul.addr %s188, 8
        %s190 = scalar_lea.vmem [#allocation2], %s189
        %p191 = pneg %p42
        %p192 = pneg %p39
        %p193 = pneg %p63
        %p194 = pneg %p60
        %p195 = pneg %p84
        %p196 = pneg %p81
        %p197 = pneg %p110
        %p198 = pneg %p107
        %s199 = sand.u32 %s97, 1
        %s200 = scalar_lea.sflag [#allocation4], %s199
        %s201 = sand.u32 %s97, 1
        %s202 = smul.addr %s201, 16
        %s203 = scalar_lea.vmem [#allocation7], %s202
        %s204 = smul.u32 2, %s21
        %s205 = smul.u32 2, %s21
        %v207 = vld [vmem:[%s177] sm:$0xf]
        %v208 = vld [vmem:[%s177 + $0x4] sm:$0xf]
        %v209 = vld [vmem:[#allocation5] sm:$0xf]
        %v210 = vld [vmem:[#allocation5 + $0x4] sm:$0xf]
        %v211 = vld [vmem:[#allocation5 + $0x8] sm:$0xf]
        %v212 = vld [vmem:[#allocation5 + $0xc] sm:$0xf]
        %v213 = vld [vmem:[#allocation5 + $0x10] sm:$0xf]
        %v214 = vld [vmem:[#allocation5 + $0x14] sm:$0xf]
        %v215 = vld [vmem:[%s2] sm:$0x1]
        %v217 = vlaneseq
        %v218 = vshrl.u32 %v217, 7
        %v219 = vsub.s32 0, %v218
        %v220 = vrot.slane %v215, %v219
        %v224 = vunpack.c.l.b16 %v207
        %v225 = vunpack.c.l.b16 %v208
        %v226 = vpack.c.b16 %v225, %v224
        %v233 = vunpack.c.l.b16 %v209
        %v234 = vunpack.c.l.b16 %v210
        %v235 = vunpack.c.l.b16 %v211
        %v236 = vunpack.c.l.b16 %v212
        %v237 = vunpack.c.l.b16 %v213
        %v238 = vunpack.c.l.b16 %v214
        %v239 = vpack.c.b16 %v234, %v233
        %v240 = vpack.c.b16 %v236, %v235
        %v241 = vpack.c.b16 %v238, %v237
        %vm245 = vcmask 392192
        %v247 = vsel %vm245, %v226, 0
        %249 = vmatprep.subr.bf16.mxu0 0
        %250 = vmatpush1.bf16.msra.mxu0 %v239
        %251 = vmatprep.subr.bf16.mxu0 0
        %252 = vmatpush1.bf16.msra.mxu0 %v240
        %253 = vmatprep.subr.bf16.mxu0 0
        %254 = vmatpush1.bf16.msra.mxu0 %v241
        %255 = vmatprep.subr.bf16.mxu0 0
        %256 = vmatpush1.bf16.msra.mxu0 0
        %257 = vmatprep.subr.bf16.mxu0 0
        %258 = vmatpush1.bf16.msra.mxu0 0
        %259 = vmatprep.subr.bf16.mxu0 0
        %260 = vmatpush1.bf16.msra.mxu0 0
        %261 = vmatprep.subr.bf16.mxu0 0
        %262 = vmatpush1.bf16.msra.mxu0 0
        %263 = vmatprep.subr.bf16.mxu0 0
        %264 = vmatpush1.bf16.msra.mxu0 0
        %265 = vmatprep.subr.bf16.mxu0 0
        %266 = vmatpush1.bf16.msra.mxu0 0
        %267 = vmatprep.subr.bf16.mxu0 0
        %268 = vmatpush1.bf16.msra.mxu0 0
        %269 = vmatprep.subr.bf16.mxu0 0
        %270 = vmatpush1.bf16.msra.mxu0 0
        %271 = vmatprep.subr.bf16.mxu0 0
        %272 = vmatpush1.bf16.msra.mxu0 0
        %273 = vmatprep.subr.bf16.mxu0 0
        %274 = vmatpush1.bf16.msra.mxu0 0
        %275 = vmatprep.subr.bf16.mxu0 0
        %276 = vmatpush1.bf16.msra.mxu0 0
        %277 = vmatprep.subr.bf16.mxu0 0
        %278 = vmatpush1.bf16.msra.mxu0 0
        %279 = vmatprep.subr.bf16.mxu0 0
        %280 = vmatpush1.bf16.msra.mxu0 0
        %281 = vmatprep.mubr.bf16.mxu0 0
        %282 = vmatmul.mubr.bf16.gmra.mrb[0].mxu0 %v247
        %v283 = vpop.f32.mrb[0].mxu0
        %v284 = vadd.f32 %v220, %v283
        %v285 = vpop.f32.mrb[0].mxu0
        %v286 = vpop.f32.mrb[0].mxu0
        %v287 = vadd.f32 %v220, %v286
        %v288 = vpop.f32.mrb[0].mxu0
        %289 = vdwg.mxu0
        %290 = vst [vmem:[%s203] sm:$0xff] %v284
        %291 = vst [vmem:[%s203 + $0x8] sm:$0xff] %v287
        %s292 = sand.u32 %s97, 1
        %s293 = scalar_lea.sflag [#allocation4], %s292
        %s294 = sand.u32 %s97, 1
        %s295 = smul.addr %s294, 16
        %s296 = scalar_lea.vmem [#allocation7], %s295
        // Predicated region
        $region41: #{tpu_custom_call.1} parent=31 // pred_check
          %p297 = pneg %p107
        $region42: #{tpu_custom_call.1} parent=31 // pred_check_branch
          %299 = sbr.rel (%p297) target = $region44
        $region43: #{tpu_custom_call.1} parent=31 // pred_region
          %s300 = smul.u32 2, %s21
          %s302 = ssub.s32 256, 256
          %303 = vsyncadd %s293, %s302
          %s304 = smul.addr %s300, 128
          %s305 = scalar_lea.hbm %s3, %s304
          %s306 = sshll.u32 %s296, 4
          %s307 = int_to_ptr.vmem [resolvable:$true] %s306
          %312 = dma.vmem_to_hbm [thread:$0]  %s307, 256, %s305, %s293, 128, 128, 8
        $region44: #{tpu_custom_call.1} parent=31 // pred_fallthru
          _
      $region32: #{tpu_custom_call.1} parent=5 // pred_fallthru
        _
      %p313 = scmp.le.s32.totalorder 2, %s16
      // Predicated region
      $region45: #{tpu_custom_call.1} parent=5 // pred_check
        %p314 = pneg %p313
      $region46: #{tpu_custom_call.1} parent=5 // pred_check_branch
        %316 = sbr.rel (%p314) target = $region48
      $region47: #{tpu_custom_call.1} parent=5 // pred_region
        %s317 = ssub.s32 %s16, 2
        // Predicated region
        $region49: #{tpu_custom_call.1} parent=47 // pred_check
          %p318 = pneg %p113
        $region50: #{tpu_custom_call.1} parent=47 // pred_check_branch
          %320 = sbr.rel (%p318) target = $region52
        $region51: #{tpu_custom_call.1} parent=47 // pred_region
          %s321 = sand.u32 %s98, 1
          %s322 = scalar_lea.sflag [#allocation4], %s321
          %s323 = sand.u32 %s98, 1
          %s324 = smul.addr %s323, 16
          %s325 = scalar_lea.vmem [#allocation7], %s324
          %326 = dma.done %s322, 256
        $region52: #{tpu_custom_call.1} parent=47 // pred_fallthru
          _
      $region48: #{tpu_custom_call.1} parent=5 // pred_fallthru
        _
    $region6: #{tpu_custom_call.1} parent=1 // loop_footer
      %s20 = sadd.s32 1, %s16
    $region7: #{tpu_custom_call.1} parent=1 // loop_footer_branch
      %15 = sbr.rel target = $region3
    $region8: #{tpu_custom_call.1} parent=1 // loop_exit
      _
    %327 = vsyncpa [#allocation3], 1
    %s328 = scalar_lea.sflag [#allocation3], 1
    %329 = vsyncpa %s328, 1
    %330 = vsyncpa [#allocation6], 1
    %331 = vsyncpa [#allocation4], 1
    %s332 = scalar_lea.sflag [#allocation4], 1
    %333 = vsyncpa %s332, 1

</llo_original>
